<compile_context>
chip_gen: v7x
topology: tpu7x:2x2x1
jax: 0.10.0
libtpu: 0.0.40
codegen_flags: <defaults>
</compile_context>

<pallas_src>
import functools

import jax
import jax.numpy as jnp
from jax.experimental import pallas as pl
from jax.experimental.pallas import tpu as pltpu

IN_DIM = 16
MID_DIM = 32
OUT_DIM = 4
NEG_SLOPE = 0.1

TILE_B_MAX = 2048  # lanes-per-tile on the batch axis (multiple of 128)


def _round_up(n, m):
    return ((n + m - 1) // m) * m


def _leaky_relu(h):
    # Identical to where(h>=0, h, 0.1*h) for 0 < slope < 1, one fewer VALU op.
    return jnp.maximum(h, NEG_SLOPE * h)


def mlp_kernel(x_ref,
               w1_ref, b1_ref,
               w2_ref, b2_ref,
               w3_ref, b3_ref,
               w4_ref, b4_ref,
               w5_ref, b5_ref,
               o_ref):
    # x_ref: (16, TILE_B) bf16; w*_ref: (out, in) bf16; b*_ref: (out, 1) f32.
    def layer(w_ref, b_ref, h_bf16):
        acc = jnp.dot(w_ref[...], h_bf16, preferred_element_type=jnp.float32)
        return acc + b_ref[...]          # f32 accumulate + f32 bias

    h = x_ref[...]                                            # bf16 (16, TB)
    h = _leaky_relu(layer(w1_ref, b1_ref, h)).astype(jnp.bfloat16)
    h = _leaky_relu(layer(w2_ref, b2_ref, h)).astype(jnp.bfloat16)
    h = _leaky_relu(layer(w3_ref, b3_ref, h)).astype(jnp.bfloat16)
    h = _leaky_relu(layer(w4_ref, b4_ref, h)).astype(jnp.bfloat16)
    logits = layer(w5_ref, b5_ref, h)                         # f32 (4, TB)

    # Softmax over the 4 outputs (sublane axis), numerically stable.
    m = jnp.max(logits, axis=0, keepdims=True)
    e = jnp.exp(logits - m)
    denom = jnp.sum(e, axis=0, keepdims=True)
    inv = pl.reciprocal(denom, approx=True)                   # EUP slot
    o_ref[...] = (e * inv).astype(o_ref.dtype)                # lane-dense store


def linear_model2_forward(x, params, tile_b_max=TILE_B_MAX):
    """x: (B, 16) float32; params: list of (W (out,in) bf16, b (out,1) f32)."""
    B = x.shape[0]
    tile_b = min(tile_b_max, _round_up(B, 128))
    b_pad = _round_up(B, tile_b)

    # Feature-major, bf16 input tile (lane-dense on the batch axis).
    xt = x.T.astype(jnp.bfloat16)                             # (16, B)
    if b_pad != B:
        xt = jnp.pad(xt, ((0, 0), (0, b_pad - B)))

    grid = (b_pad // tile_b,)

    in_specs = [pl.BlockSpec((IN_DIM, tile_b), lambda i: (0, i))]
    flat_args = [xt]
    for w, b in params:
        flat_args += [w, b]
        # Full-array blocks, constant block index -> resident in VMEM.
        in_specs += [pl.BlockSpec(w.shape, lambda i: (0, 0)),
                     pl.BlockSpec(b.shape, lambda i: (0, 0))]
    out_specs = pl.BlockSpec((OUT_DIM, tile_b), lambda i: (0, i))

    flops = 2 * b_pad * (IN_DIM * MID_DIM + 3 * MID_DIM * MID_DIM
                         + MID_DIM * OUT_DIM)
    weight_bytes = sum(int(w.size) * 2 + int(b.size) * 4 for w, b in params)
    bytes_accessed = int(xt.size) * 2 + b_pad * OUT_DIM * 4 + weight_bytes

    out_t = pl.pallas_call(
        mlp_kernel,
        out_shape=jax.ShapeDtypeStruct((OUT_DIM, b_pad), jnp.float32),
        grid=grid,
        in_specs=in_specs,
        out_specs=out_specs,
        compiler_params=pltpu.CompilerParams(
            dimension_semantics=("parallel",)),   # megacore on v7x, no-op v5e/v6e
        cost_estimate=pl.CostEstimate(
            flops=flops,
            transcendentals=b_pad * OUT_DIM,
            bytes_accessed=bytes_accessed),
    )(*flat_args)

    return out_t[:, :B].T                                     # (B, 4) f32


def init_params(key):
    """PyTorch-style shapes: W is (out, in) (stored bf16), b is (out, 1) f32.

    Uniform(-1/sqrt(in), 1/sqrt(in)), same family as torch's default init.
    """
    dims = [(IN_DIM, MID_DIM), (MID_DIM, MID_DIM), (MID_DIM, MID_DIM),
            (MID_DIM, MID_DIM), (MID_DIM, OUT_DIM)]
    params = []
    for d_in, d_out in dims:
        key, kw, kb = jax.random.split(key, 3)
        bound = 1.0 / (d_in ** 0.5)
        w = jax.random.uniform(kw, (d_out, d_in), jnp.float32,
                               -bound, bound).astype(jnp.bfloat16)
        b = jax.random.uniform(kb, (d_out, 1), jnp.float32, -bound, bound)
        params.append((w, b))
    return params


def reference_forward(x, params):
    """Pure-JAX reference mirroring the kernel numerics (bf16 MXU feeds)."""
    h = x.astype(jnp.bfloat16)
    n = len(params)
    for i, (w, b) in enumerate(params):
        h = jnp.dot(h, w.T, preferred_element_type=jnp.float32) + b[:, 0]
        if i < n - 1:
            h = jnp.maximum(h, NEG_SLOPE * h).astype(jnp.bfloat16)
    return jax.nn.softmax(h, axis=-1)


if __name__ == "__main__":
    key = jax.random.PRNGKey(0)
    kx, kp = jax.random.split(key)

    B = 8
    x = jax.random.normal(kx, (B, IN_DIM), jnp.float32)
    params = init_params(kp)

    out = linear_model2_forward(x, params)
    out = jax.block_until_ready(out)

    ref = reference_forward(x, params)
    assert out.shape == (B, OUT_DIM)
    # bf16 MXU feeds + approx reciprocal -> loosened tolerance vs f32-exact.
    assert jnp.allclose(out, ref, atol=5e-3, rtol=5e-3), "mismatch vs reference"
    assert jnp.allclose(jnp.sum(out, axis=-1), 1.0, atol=5e-3), "softmax rows != 1"

    print("KERNEL_OK")
</pallas_src>

<mosaic_0001>
module attributes {stable_mosaic.version = 11 : i64} {
  func.func @mlp_kernel(%arg0: i32, %arg1: memref<16x128xbf16, #tpu.memory_space<vmem>>, %arg2: memref<32x16xbf16, #tpu.memory_space<vmem>>, %arg3: memref<32x1xf32, #tpu.memory_space<vmem>>, %arg4: memref<32x32xbf16, #tpu.memory_space<vmem>>, %arg5: memref<32x1xf32, #tpu.memory_space<vmem>>, %arg6: memref<32x32xbf16, #tpu.memory_space<vmem>>, %arg7: memref<32x1xf32, #tpu.memory_space<vmem>>, %arg8: memref<32x32xbf16, #tpu.memory_space<vmem>>, %arg9: memref<32x1xf32, #tpu.memory_space<vmem>>, %arg10: memref<4x32xbf16, #tpu.memory_space<vmem>>, %arg11: memref<4x1xf32, #tpu.memory_space<vmem>>, %arg12: memref<4x128xf32, #tpu.memory_space<vmem>>) attributes {dimension_semantics = [#tpu.dimension_semantics<parallel>], iteration_bounds = array<i64: 1>, scalar_prefetch = 0 : i64, scratch_operands = 0 : i64, tpu.core_type = #tpu.core_type<tc>, window_params = [{transform_indices = @transform_0, window_bounds = array<i64: 16, 128>}, {pipeline_mode = #tpu.pipeline_mode<synchronous>, transform_indices = @transform_1, window_bounds = array<i64: 32, 16>}, {pipeline_mode = #tpu.pipeline_mode<synchronous>, transform_indices = @transform_2, window_bounds = array<i64: 32, 1>}, {pipeline_mode = #tpu.pipeline_mode<synchronous>, transform_indices = @transform_3, window_bounds = array<i64: 32, 32>}, {pipeline_mode = #tpu.pipeline_mode<synchronous>, transform_indices = @transform_4, window_bounds = array<i64: 32, 1>}, {pipeline_mode = #tpu.pipeline_mode<synchronous>, transform_indices = @transform_5, window_bounds = array<i64: 32, 32>}, {pipeline_mode = #tpu.pipeline_mode<synchronous>, transform_indices = @transform_6, window_bounds = array<i64: 32, 1>}, {pipeline_mode = #tpu.pipeline_mode<synchronous>, transform_indices = @transform_7, window_bounds = array<i64: 32, 32>}, {pipeline_mode = #tpu.pipeline_mode<synchronous>, transform_indices = @transform_8, window_bounds = array<i64: 32, 1>}, {pipeline_mode = #tpu.pipeline_mode<synchronous>, transform_indices = @transform_9, window_bounds = array<i64: 4, 32>}, {pipeline_mode = #tpu.pipeline_mode<synchronous>, transform_indices = @transform_10, window_bounds = array<i64: 4, 1>}, {transform_indices = @transform_11, window_bounds = array<i64: 4, 128>}]} {
    %c0 = arith.constant 0 : index
    %c0_0 = arith.constant 0 : index
    %0 = vector.load %arg1[%c0, %c0_0] : memref<16x128xbf16, #tpu.memory_space<vmem>>, vector<16x128xbf16>
    %c0_1 = arith.constant 0 : index
    %c0_2 = arith.constant 0 : index
    %1 = vector.load %arg2[%c0_1, %c0_2] : memref<32x16xbf16, #tpu.memory_space<vmem>>, vector<32x16xbf16>
    %cst = arith.constant dense<0.000000e+00> : vector<32x128xf32>
    %2 = tpu.matmul %1, %0, %cst {dimension_numbers = #tpu.dot_dimension_numbers<[1], [0], [0], [1], [0, 0, 1, 1], [], []>} : vector<32x16xbf16>, vector<16x128xbf16>, vector<32x128xf32> -> vector<32x128xf32>
    %c0_3 = arith.constant 0 : index
    %c0_4 = arith.constant 0 : index
    %3 = vector.load %arg3[%c0_3, %c0_4] : memref<32x1xf32, #tpu.memory_space<vmem>>, vector<32x1xf32>
    %4 = vector.broadcast %3 : vector<32x1xf32> to vector<32x128xf32>
    %5 = arith.addf %2, %4 : vector<32x128xf32>
    %cst_5 = arith.constant 1.000000e-01 : f32
    %6 = vector.broadcast %cst_5 : f32 to vector<32x128xf32>
    %7 = arith.mulf %6, %5 : vector<32x128xf32>
    %8 = arith.maximumf %5, %7 : vector<32x128xf32>
    %9 = arith.truncf %8 : vector<32x128xf32> to vector<32x128xbf16>
    %c0_6 = arith.constant 0 : index
    %c0_7 = arith.constant 0 : index
    %10 = vector.load %arg4[%c0_6, %c0_7] : memref<32x32xbf16, #tpu.memory_space<vmem>>, vector<32x32xbf16>
    %cst_8 = arith.constant dense<0.000000e+00> : vector<32x128xf32>
    %11 = tpu.matmul %10, %9, %cst_8 {dimension_numbers = #tpu.dot_dimension_numbers<[1], [0], [0], [1], [0, 0, 1, 1], [], []>} : vector<32x32xbf16>, vector<32x128xbf16>, vector<32x128xf32> -> vector<32x128xf32>
    %c0_9 = arith.constant 0 : index
    %c0_10 = arith.constant 0 : index
    %12 = vector.load %arg5[%c0_9, %c0_10] : memref<32x1xf32, #tpu.memory_space<vmem>>, vector<32x1xf32>
    %13 = vector.broadcast %12 : vector<32x1xf32> to vector<32x128xf32>
    %14 = arith.addf %11, %13 : vector<32x128xf32>
    %cst_11 = arith.constant 1.000000e-01 : f32
    %15 = vector.broadcast %cst_11 : f32 to vector<32x128xf32>
    %16 = arith.mulf %15, %14 : vector<32x128xf32>
    %17 = arith.maximumf %14, %16 : vector<32x128xf32>
    %18 = arith.truncf %17 : vector<32x128xf32> to vector<32x128xbf16>
    %c0_12 = arith.constant 0 : index
    %c0_13 = arith.constant 0 : index
    %19 = vector.load %arg6[%c0_12, %c0_13] : memref<32x32xbf16, #tpu.memory_space<vmem>>, vector<32x32xbf16>
    %cst_14 = arith.constant dense<0.000000e+00> : vector<32x128xf32>
    %20 = tpu.matmul %19, %18, %cst_14 {dimension_numbers = #tpu.dot_dimension_numbers<[1], [0], [0], [1], [0, 0, 1, 1], [], []>} : vector<32x32xbf16>, vector<32x128xbf16>, vector<32x128xf32> -> vector<32x128xf32>
    %c0_15 = arith.constant 0 : index
    %c0_16 = arith.constant 0 : index
    %21 = vector.load %arg7[%c0_15, %c0_16] : memref<32x1xf32, #tpu.memory_space<vmem>>, vector<32x1xf32>
    %22 = vector.broadcast %21 : vector<32x1xf32> to vector<32x128xf32>
    %23 = arith.addf %20, %22 : vector<32x128xf32>
    %cst_17 = arith.constant 1.000000e-01 : f32
    %24 = vector.broadcast %cst_17 : f32 to vector<32x128xf32>
    %25 = arith.mulf %24, %23 : vector<32x128xf32>
    %26 = arith.maximumf %23, %25 : vector<32x128xf32>
    %27 = arith.truncf %26 : vector<32x128xf32> to vector<32x128xbf16>
    %c0_18 = arith.constant 0 : index
    %c0_19 = arith.constant 0 : index
    %28 = vector.load %arg8[%c0_18, %c0_19] : memref<32x32xbf16, #tpu.memory_space<vmem>>, vector<32x32xbf16>
    %cst_20 = arith.constant dense<0.000000e+00> : vector<32x128xf32>
    %29 = tpu.matmul %28, %27, %cst_20 {dimension_numbers = #tpu.dot_dimension_numbers<[1], [0], [0], [1], [0, 0, 1, 1], [], []>} : vector<32x32xbf16>, vector<32x128xbf16>, vector<32x128xf32> -> vector<32x128xf32>
    %c0_21 = arith.constant 0 : index
    %c0_22 = arith.constant 0 : index
    %30 = vector.load %arg9[%c0_21, %c0_22] : memref<32x1xf32, #tpu.memory_space<vmem>>, vector<32x1xf32>
    %31 = vector.broadcast %30 : vector<32x1xf32> to vector<32x128xf32>
    %32 = arith.addf %29, %31 : vector<32x128xf32>
    %cst_23 = arith.constant 1.000000e-01 : f32
    %33 = vector.broadcast %cst_23 : f32 to vector<32x128xf32>
    %34 = arith.mulf %33, %32 : vector<32x128xf32>
    %35 = arith.maximumf %32, %34 : vector<32x128xf32>
    %36 = arith.truncf %35 : vector<32x128xf32> to vector<32x128xbf16>
    %c0_24 = arith.constant 0 : index
    %c0_25 = arith.constant 0 : index
    %37 = vector.load %arg10[%c0_24, %c0_25] : memref<4x32xbf16, #tpu.memory_space<vmem>>, vector<4x32xbf16>
    %cst_26 = arith.constant dense<0.000000e+00> : vector<4x128xf32>
    %38 = tpu.matmul %37, %36, %cst_26 {dimension_numbers = #tpu.dot_dimension_numbers<[1], [0], [0], [1], [0, 0, 1, 1], [], []>} : vector<4x32xbf16>, vector<32x128xbf16>, vector<4x128xf32> -> vector<4x128xf32>
    %c0_27 = arith.constant 0 : index
    %c0_28 = arith.constant 0 : index
    %39 = vector.load %arg11[%c0_27, %c0_28] : memref<4x1xf32, #tpu.memory_space<vmem>>, vector<4x1xf32>
    %40 = vector.broadcast %39 : vector<4x1xf32> to vector<4x128xf32>
    %41 = arith.addf %38, %40 : vector<4x128xf32>
    %cst_29 = arith.constant dense<0xFF800000> : vector<128xf32>
    %42 = vector.multi_reduction <maximumf>, %41, %cst_29 [0] : vector<4x128xf32> to vector<128xf32>
    %43 = vector.shape_cast %42 : vector<128xf32> to vector<1x128xf32>
    %44 = vector.broadcast %43 : vector<1x128xf32> to vector<4x128xf32>
    %45 = arith.subf %41, %44 : vector<4x128xf32>
    %46 = math.exp %45 : vector<4x128xf32>
    %cst_30 = arith.constant dense<0.000000e+00> : vector<128xf32>
    %47 = vector.multi_reduction <add>, %46, %cst_30 [0] : vector<4x128xf32> to vector<128xf32>
    %48 = vector.shape_cast %47 : vector<128xf32> to vector<1x128xf32>
    %49 = tpu.reciprocal %48 {approx = true} : vector<1x128xf32> -> vector<1x128xf32>
    %50 = vector.broadcast %49 : vector<1x128xf32> to vector<4x128xf32>
    %51 = arith.mulf %46, %50 : vector<4x128xf32>
    %c0_31 = arith.constant 0 : index
    %c0_32 = arith.constant 0 : index
    %52 = vector.load %arg12[%c0_31, %c0_32] : memref<4x128xf32, #tpu.memory_space<vmem>>, vector<4x128xf32>
    tpu.vector_store %arg12[%c0_31, %c0_32], %51 {strides = array<i32>} : memref<4x128xf32, #tpu.memory_space<vmem>>, vector<4x128xf32>,
    return
  }
  func.func @transform_0(%arg0: i32) -> (i32, i32) {
    %c0_i32 = arith.constant 0 : i32
    %c0_i32_0 = arith.constant 0 : i32
    return %c0_i32, %arg0 : i32, i32
  }
  func.func @transform_1(%arg0: i32) -> (i32, i32) {
    %c0_i32 = arith.constant 0 : i32
    %c0_i32_0 = arith.constant 0 : i32
    %c0_i32_1 = arith.constant 0 : i32
    return %c0_i32, %c0_i32_0 : i32, i32
  }
  func.func @transform_2(%arg0: i32) -> (i32, i32) {
    %c0_i32 = arith.constant 0 : i32
    %c0_i32_0 = arith.constant 0 : i32
    %c0_i32_1 = arith.constant 0 : i32
    return %c0_i32, %c0_i32_0 : i32, i32
  }
  func.func @transform_3(%arg0: i32) -> (i32, i32) {
    %c0_i32 = arith.constant 0 : i32
    %c0_i32_0 = arith.constant 0 : i32
    %c0_i32_1 = arith.constant 0 : i32
    return %c0_i32, %c0_i32_0 : i32, i32
  }
  func.func @transform_4(%arg0: i32) -> (i32, i32) {
    %c0_i32 = arith.constant 0 : i32
    %c0_i32_0 = arith.constant 0 : i32
    %c0_i32_1 = arith.constant 0 : i32
    return %c0_i32, %c0_i32_0 : i32, i32
  }
  func.func @transform_5(%arg0: i32) -> (i32, i32) {
    %c0_i32 = arith.constant 0 : i32
    %c0_i32_0 = arith.constant 0 : i32
    %c0_i32_1 = arith.constant 0 : i32
    return %c0_i32, %c0_i32_0 : i32, i32
  }
  func.func @transform_6(%arg0: i32) -> (i32, i32) {
    %c0_i32 = arith.constant 0 : i32
    %c0_i32_0 = arith.constant 0 : i32
    %c0_i32_1 = arith.constant 0 : i32
    return %c0_i32, %c0_i32_0 : i32, i32
  }
  func.func @transform_7(%arg0: i32) -> (i32, i32) {
    %c0_i32 = arith.constant 0 : i32
    %c0_i32_0 = arith.constant 0 : i32
    %c0_i32_1 = arith.constant 0 : i32
    return %c0_i32, %c0_i32_0 : i32, i32
  }
  func.func @transform_8(%arg0: i32) -> (i32, i32) {
    %c0_i32 = arith.constant 0 : i32
    %c0_i32_0 = arith.constant 0 : i32
    %c0_i32_1 = arith.constant 0 : i32
    return %c0_i32, %c0_i32_0 : i32, i32
  }
  func.func @transform_9(%arg0: i32) -> (i32, i32) {
    %c0_i32 = arith.constant 0 : i32
    %c0_i32_0 = arith.constant 0 : i32
    %c0_i32_1 = arith.constant 0 : i32
    return %c0_i32, %c0_i32_0 : i32, i32
  }
  func.func @transform_10(%arg0: i32) -> (i32, i32) {
    %c0_i32 = arith.constant 0 : i32
    %c0_i32_0 = arith.constant 0 : i32
    %c0_i32_1 = arith.constant 0 : i32
    return %c0_i32, %c0_i32_0 : i32, i32
  }
  func.func @transform_11(%arg0: i32) -> (i32, i32) {
    %c0_i32 = arith.constant 0 : i32
    %c0_i32_0 = arith.constant 0 : i32
    return %c0_i32, %arg0 : i32, i32
  }
}

</mosaic_0001>

<llo_original>
// kernel: tpu_custom_call.1
$region0: #{tpu_custom_call.1}
  #allocation0 [shape = 'u32[]', space=smem, size = 0x4, offset = 0x4, fixed_abs, tag = 'smem constant byte address 0x4 - core index']
  #allocation1 [shape = 'u32[144,128]{1,0:T(1,128)}', space=vmem, size = 0x12000, scoped, tag = 'internal scratch']
  %s0 = inlined_call_operand.vmem [shape: bf16[16,128], index: 0, kind: input, shape index: {}]
  %s1 = inlined_call_operand.vmem [shape: bf16[32,16], index: 1, kind: input, shape index: {}]
  %s2 = inlined_call_operand.vmem [shape: f32[32,1], index: 2, kind: input, shape index: {}]
  %s3 = inlined_call_operand.vmem [shape: bf16[32,32], index: 3, kind: input, shape index: {}]
  %s4 = inlined_call_operand.vmem [shape: f32[32,1], index: 4, kind: input, shape index: {}]
  %s5 = inlined_call_operand.vmem [shape: bf16[32,32], index: 5, kind: input, shape index: {}]
  %s6 = inlined_call_operand.vmem [shape: f32[32,1], index: 6, kind: input, shape index: {}]
  %s7 = inlined_call_operand.vmem [shape: bf16[32,32], index: 7, kind: input, shape index: {}]
  %s8 = inlined_call_operand.vmem [shape: f32[32,1], index: 8, kind: input, shape index: {}]
  %s9 = inlined_call_operand.vmem [shape: bf16[4,32], index: 9, kind: input, shape index: {}]
  %s10 = inlined_call_operand.vmem [shape: f32[4,1], index: 10, kind: input, shape index: {}]
  %s11 = inlined_call_operand.hbm [shape: f32[4,128], index: 11, kind: output, shape index: {}]
  %s12 = sld [smem:[#allocation0]]
  $region54: #{tpu_custom_call.1} parent=0
    _
  %s14 = ssub.s32 1, %s12
  %s15 = scalar_select 0, %s14, %s12
  $region1: #{tpu_custom_call.1} parent=0
    #allocation2 [shape = 'u8[2048]{0}', space=vmem, size = 0x800, scoped, tag = 'output window, operand 0, single buffered']
    #allocation3 [shape = 's32[1]{0}', space=sflag, size = 0x4, scoped, tag = 'scoped memory for tpu_custom_call.1']
    %16 = vsyncpa [#allocation3], 0
    // Predicated region
    $region2: #{tpu_custom_call.1} parent=1 // pred_check
      _
    $region3: #{tpu_custom_call.1} parent=1 // pred_check_branch
      %18 = sbr.rel (0) target = $region5
    $region4: #{tpu_custom_call.1} parent=1 // pred_region
      _
    $region5: #{tpu_custom_call.1} parent=1 // pred_fallthru
      _
    // Predicated region
    $region6: #{tpu_custom_call.1} parent=1 // pred_check
      _
    $region7: #{tpu_custom_call.1} parent=1 // pred_check_branch
      %20 = sbr.rel (0) target = $region9
    $region8: #{tpu_custom_call.1} parent=1 // pred_region
      _
    $region9: #{tpu_custom_call.1} parent=1 // pred_fallthru
      _
    // Predicated region
    $region10: #{tpu_custom_call.1} parent=1 // pred_check
      _
    $region11: #{tpu_custom_call.1} parent=1 // pred_check_branch
      %22 = sbr.rel (0) target = $region13
    $region12: #{tpu_custom_call.1} parent=1 // pred_region
      _
    $region13: #{tpu_custom_call.1} parent=1 // pred_fallthru
      _
    // Predicated region
    $region14: #{tpu_custom_call.1} parent=1 // pred_check
      _
    $region15: #{tpu_custom_call.1} parent=1 // pred_check_branch
      %24 = sbr.rel (0) target = $region17
    $region16: #{tpu_custom_call.1} parent=1 // pred_region
      _
    $region17: #{tpu_custom_call.1} parent=1 // pred_fallthru
      _
    // Predicated region
    $region18: #{tpu_custom_call.1} parent=1 // pred_check
      _
    $region19: #{tpu_custom_call.1} parent=1 // pred_check_branch
      %26 = sbr.rel (0) target = $region21
    $region20: #{tpu_custom_call.1} parent=1 // pred_region
      _
    $region21: #{tpu_custom_call.1} parent=1 // pred_fallthru
      _
    // Predicated region
    $region22: #{tpu_custom_call.1} parent=1 // pred_check
      _
    $region23: #{tpu_custom_call.1} parent=1 // pred_check_branch
      %28 = sbr.rel (0) target = $region25
    $region24: #{tpu_custom_call.1} parent=1 // pred_region
      _
    $region25: #{tpu_custom_call.1} parent=1 // pred_fallthru
      _
    // Predicated region
    $region26: #{tpu_custom_call.1} parent=1 // pred_check
      _
    $region27: #{tpu_custom_call.1} parent=1 // pred_check_branch
      %30 = sbr.rel (0) target = $region29
    $region28: #{tpu_custom_call.1} parent=1 // pred_region
      _
    $region29: #{tpu_custom_call.1} parent=1 // pred_fallthru
      _
    // Predicated region
    $region30: #{tpu_custom_call.1} parent=1 // pred_check
      _
    $region31: #{tpu_custom_call.1} parent=1 // pred_check_branch
      %32 = sbr.rel (0) target = $region33
    $region32: #{tpu_custom_call.1} parent=1 // pred_region
      _
    $region33: #{tpu_custom_call.1} parent=1 // pred_fallthru
      _
    // Predicated region
    $region34: #{tpu_custom_call.1} parent=1 // pred_check
      _
    $region35: #{tpu_custom_call.1} parent=1 // pred_check_branch
      %34 = sbr.rel (0) target = $region37
    $region36: #{tpu_custom_call.1} parent=1 // pred_region
      _
    $region37: #{tpu_custom_call.1} parent=1 // pred_fallthru
      _
    // Predicated region
    $region38: #{tpu_custom_call.1} parent=1 // pred_check
      _
    $region39: #{tpu_custom_call.1} parent=1 // pred_check_branch
      %36 = sbr.rel (0) target = $region41
    $region40: #{tpu_custom_call.1} parent=1 // pred_region
      _
    $region41: #{tpu_custom_call.1} parent=1 // pred_fallthru
      _
    // Predicated region
    $region42: #{tpu_custom_call.1} parent=1 // pred_check
      _
    $region43: #{tpu_custom_call.1} parent=1 // pred_check_branch
      %38 = sbr.rel (0) target = $region45
    $region44: #{tpu_custom_call.1} parent=1 // pred_region
      _
    $region45: #{tpu_custom_call.1} parent=1 // pred_fallthru
      _
    %v40 = vld [vmem:[%s0] sm:$0xf]
    %v41 = vld [vmem:[%s0 + $0x4] sm:$0xf]
    %v42 = vld [vmem:[%s1] sm:$0xf]
    %v43 = vld [vmem:[%s1 + $0x4] sm:$0xf]
    %v44 = vld [vmem:[%s1 + $0x8] sm:$0xf]
    %v45 = vld [vmem:[%s1 + $0xc] sm:$0xf]
    %v46 = vld [vmem:[%s2] sm:$0xff]
    %v47 = vld [vmem:[%s2 + $0x8] sm:$0xff]
    %v48 = vld [vmem:[%s2 + $0x10] sm:$0xff]
    %v49 = vld [vmem:[%s2 + $0x18] sm:$0xff]
    %51 = vset.pattern.permute.xlu0 0
    %52 = vperm.xlu0 %51, %v46
    %v53 = vpop.permute.xlu0 %52
    %56 = vset.pattern.permute.xlu0 0
    %57 = vperm.xlu0 %56, %v47
    %v58 = vpop.permute.xlu0 %57
    %61 = vset.pattern.permute.xlu0 0
    %62 = vperm.xlu0 %61, %v48
    %v63 = vpop.permute.xlu0 %62
    %66 = vset.pattern.permute.xlu0 0
    %67 = vperm.xlu0 %66, %v49
    %v68 = vpop.permute.xlu0 %67
    %v74 = vunpack.c.l.b16 %v42
    %v75 = vunpack.c.l.b16 %v43
    %v76 = vunpack.c.l.b16 %v44
    %v77 = vunpack.c.l.b16 %v45
    %v78 = vpack.c.b16 %v75, %v74
    %v79 = vpack.c.b16 %v77, %v76
    %v82 = vunpack.c.l.b16 %v40
    %v83 = vunpack.c.l.b16 %v41
    %v84 = vpack.c.b16 %v83, %v82
    %vm86 = vcmask 130048
    %v88 = vsel %vm86, %v78, 0
    %v91 = vsel %vm86, %v79, 0
    %93 = vmatprep.subr.bf16.mxu0 0
    %94 = vmatpush1.bf16.msra.mxu0 %v84
    %95 = vmatprep.subr.bf16.mxu0 0
    %96 = vmatpush1.bf16.msra.mxu0 0
    %97 = vmatprep.subr.bf16.mxu0 0
    %98 = vmatpush1.bf16.msra.mxu0 0
    %99 = vmatprep.subr.bf16.mxu0 0
    %100 = vmatpush1.bf16.msra.mxu0 0
    %101 = vmatprep.subr.bf16.mxu0 0
    %102 = vmatpush1.bf16.msra.mxu0 0
    %103 = vmatprep.subr.bf16.mxu0 0
    %104 = vmatpush1.bf16.msra.mxu0 0
    %105 = vmatprep.subr.bf16.mxu0 0
    %106 = vmatpush1.bf16.msra.mxu0 0
    %107 = vmatprep.subr.bf16.mxu0 0
    %108 = vmatpush1.bf16.msra.mxu0 0
    %109 = vmatprep.subr.bf16.mxu0 0
    %110 = vmatpush1.bf16.msra.mxu0 0
    %111 = vmatprep.subr.bf16.mxu0 0
    %112 = vmatpush1.bf16.msra.mxu0 0
    %113 = vmatprep.subr.bf16.mxu0 0
    %114 = vmatpush1.bf16.msra.mxu0 0
    %115 = vmatprep.subr.bf16.mxu0 0
    %116 = vmatpush1.bf16.msra.mxu0 0
    %117 = vmatprep.subr.bf16.mxu0 0
    %118 = vmatpush1.bf16.msra.mxu0 0
    %119 = vmatprep.subr.bf16.mxu0 0
    %120 = vmatpush1.bf16.msra.mxu0 0
    %121 = vmatprep.subr.bf16.mxu0 0
    %122 = vmatpush1.bf16.msra.mxu0 0
    %123 = vmatprep.subr.bf16.mxu0 0
    %124 = vmatpush1.bf16.msra.mxu0 0
    %125 = vmatprep.mubr.bf16.mxu0 0
    %126 = vmatmul.mubr.bf16.gmra.mrb[0].mxu0 %v88
    %v127 = vpop.f32.mrb[0].mxu0
    %v128 = vadd.f32 %v53, %v127
    %v129 = vpop.f32.mrb[0].mxu0
    %v130 = vpop.f32.mrb[0].mxu0
    %v131 = vadd.f32 %v58, %v130
    %v132 = vpop.f32.mrb[0].mxu0
    %133 = vmatprep.mubr.bf16.mxu0 0
    %134 = vmatmul.mubr.bf16.gmra.mrb[0].mxu0 %v91
    %v135 = vpop.f32.mrb[0].mxu0
    %v136 = vadd.f32 %v63, %v135
    %v137 = vpop.f32.mrb[0].mxu0
    %v138 = vpop.f32.mrb[0].mxu0
    %v139 = vadd.f32 %v68, %v138
    %v140 = vpop.f32.mrb[0].mxu0
    %141 = vdwg.mxu0
    %v142 = vmul.f32 %v128, 0.1
    %v143 = vmul.f32 %v131, 0.1
    %v144 = vmul.f32 %v136, 0.1
    %v145 = vmul.f32 %v139, 0.1
    %v146 = vmax.f32 %v128, %v142
    %v147 = vmax.f32 %v131, %v143
    %v148 = vmax.f32 %v136, %v144
    %v149 = vmax.f32 %v139, %v145
    %v150 = vpack.c.bf16 %v147, %v146
    %v151 = vpack.c.bf16 %v149, %v148
    %v152 = vld [vmem:[%s3] sm:$0xf]
    %v153 = vld [vmem:[%s3 + $0x4] sm:$0xf]
    %v154 = vld [vmem:[%s3 + $0x8] sm:$0xf]
    %v155 = vld [vmem:[%s3 + $0xc] sm:$0xf]
    %v156 = vld [vmem:[%s4] sm:$0xff]
    %v157 = vld [vmem:[%s4 + $0x8] sm:$0xff]
    %v158 = vld [vmem:[%s4 + $0x10] sm:$0xff]
    %v159 = vld [vmem:[%s4 + $0x18] sm:$0xff]
    %161 = vset.pattern.permute.xlu0 0
    %162 = vperm.xlu0 %161, %v156
    %v163 = vpop.permute.xlu0 %162
    %166 = vset.pattern.permute.xlu0 0
    %167 = vperm.xlu0 %166, %v157
    %v168 = vpop.permute.xlu0 %167
    %171 = vset.pattern.permute.xlu0 0
    %172 = vperm.xlu0 %171, %v158
    %v173 = vpop.permute.xlu0 %172
    %176 = vset.pattern.permute.xlu0 0
    %177 = vperm.xlu0 %176, %v159
    %v178 = vpop.permute.xlu0 %177
    %v184 = vunpack.c.l.b16 %v152
    %v185 = vunpack.c.l.b16 %v153
    %v186 = vunpack.c.l.b16 %v154
    %v187 = vunpack.c.l.b16 %v155
    %v188 = vpack.c.b16 %v185, %v184
    %v189 = vpack.c.b16 %v187, %v186
    %vm190 = vcmask 261120
    %v192 = vsel %vm190, %v188, 0
    %v195 = vsel %vm190, %v189, 0
    %197 = vmatprep.subr.bf16.mxu0 0
    %198 = vmatpush1.bf16.msra.mxu0 %v150
    %199 = vmatprep.subr.bf16.mxu0 0
    %200 = vmatpush1.bf16.msra.mxu0 %v151
    %201 = vmatprep.subr.bf16.mxu0 0
    %202 = vmatpush1.bf16.msra.mxu0 0
    %203 = vmatprep.subr.bf16.mxu0 0
    %204 = vmatpush1.bf16.msra.mxu0 0
    %205 = vmatprep.subr.bf16.mxu0 0
    %206 = vmatpush1.bf16.msra.mxu0 0
    %207 = vmatprep.subr.bf16.mxu0 0
    %208 = vmatpush1.bf16.msra.mxu0 0
    %209 = vmatprep.subr.bf16.mxu0 0
    %210 = vmatpush1.bf16.msra.mxu0 0
    %211 = vmatprep.subr.bf16.mxu0 0
    %212 = vmatpush1.bf16.msra.mxu0 0
    %213 = vmatprep.subr.bf16.mxu0 0
    %214 = vmatpush1.bf16.msra.mxu0 0
    %215 = vmatprep.subr.bf16.mxu0 0
    %216 = vmatpush1.bf16.msra.mxu0 0
    %217 = vmatprep.subr.bf16.mxu0 0
    %218 = vmatpush1.bf16.msra.mxu0 0
    %219 = vmatprep.subr.bf16.mxu0 0
    %220 = vmatpush1.bf16.msra.mxu0 0
    %221 = vmatprep.subr.bf16.mxu0 0
    %222 = vmatpush1.bf16.msra.mxu0 0
    %223 = vmatprep.subr.bf16.mxu0 0
    %224 = vmatpush1.bf16.msra.mxu0 0
    %225 = vmatprep.subr.bf16.mxu0 0
    %226 = vmatpush1.bf16.msra.mxu0 0
    %227 = vmatprep.subr.bf16.mxu0 0
    %228 = vmatpush1.bf16.msra.mxu0 0
    %229 = vmatprep.mubr.bf16.mxu0 0
    %230 = vmatmul.mubr.bf16.gmra.mrb[0].mxu0 %v192
    %v231 = vpop.f32.mrb[0].mxu0
    %v232 = vadd.f32 %v163, %v231
    %v233 = vpop.f32.mrb[0].mxu0
    %v234 = vpop.f32.mrb[0].mxu0
    %v235 = vadd.f32 %v168, %v234
    %v236 = vpop.f32.mrb[0].mxu0
    %237 = vmatprep.mubr.bf16.mxu0 0
    %238 = vmatmul.mubr.bf16.gmra.mrb[0].mxu0 %v195
    %v239 = vpop.f32.mrb[0].mxu0
    %v240 = vadd.f32 %v173, %v239
    %v241 = vpop.f32.mrb[0].mxu0
    %v242 = vpop.f32.mrb[0].mxu0
    %v243 = vadd.f32 %v178, %v242
    %v244 = vpop.f32.mrb[0].mxu0
    %245 = vdwg.mxu0
    %v246 = vmul.f32 %v232, 0.1
    %v247 = vmul.f32 %v235, 0.1
    %v248 = vmul.f32 %v240, 0.1
    %v249 = vmul.f32 %v243, 0.1
    %v250 = vmax.f32 %v232, %v246
    %v251 = vmax.f32 %v235, %v247
    %v252 = vmax.f32 %v240, %v248
    %v253 = vmax.f32 %v243, %v249
    %v254 = vpack.c.bf16 %v251, %v250
    %v255 = vpack.c.bf16 %v253, %v252
    %v256 = vld [vmem:[%s5] sm:$0xf]
    %v257 = vld [vmem:[%s5 + $0x4] sm:$0xf]
    %v258 = vld [vmem:[%s5 + $0x8] sm:$0xf]
    %v259 = vld [vmem:[%s5 + $0xc] sm:$0xf]
    %v260 = vld [vmem:[%s6] sm:$0xff]
    %v261 = vld [vmem:[%s6 + $0x8] sm:$0xff]
    %v262 = vld [vmem:[%s6 + $0x10] sm:$0xff]
    %v263 = vld [vmem:[%s6 + $0x18] sm:$0xff]
    %265 = vset.pattern.permute.xlu0 0
    %266 = vperm.xlu0 %265, %v260
    %v267 = vpop.permute.xlu0 %266
    %270 = vset.pattern.permute.xlu0 0
    %271 = vperm.xlu0 %270, %v261
    %v272 = vpop.permute.xlu0 %271
    %275 = vset.pattern.permute.xlu0 0
    %276 = vperm.xlu0 %275, %v262
    %v277 = vpop.permute.xlu0 %276
    %280 = vset.pattern.permute.xlu0 0
    %281 = vperm.xlu0 %280, %v263
    %v282 = vpop.permute.xlu0 %281
    %v288 = vunpack.c.l.b16 %v256
    %v289 = vunpack.c.l.b16 %v257
    %v290 = vunpack.c.l.b16 %v258
    %v291 = vunpack.c.l.b16 %v259
    %v292 = vpack.c.b16 %v289, %v288
    %v293 = vpack.c.b16 %v291, %v290
    %v295 = vsel %vm190, %v292, 0
    %v298 = vsel %vm190, %v293, 0
    %300 = vmatprep.subr.bf16.mxu0 0
    %301 = vmatpush1.bf16.msra.mxu0 %v254
    %302 = vmatprep.subr.bf16.mxu0 0
    %303 = vmatpush1.bf16.msra.mxu0 %v255
    %304 = vmatprep.subr.bf16.mxu0 0
    %305 = vmatpush1.bf16.msra.mxu0 0
    %306 = vmatprep.subr.bf16.mxu0 0
    %307 = vmatpush1.bf16.msra.mxu0 0
    %308 = vmatprep.subr.bf16.mxu0 0
    %309 = vmatpush1.bf16.msra.mxu0 0
    %310 = vmatprep.subr.bf16.mxu0 0
    %311 = vmatpush1.bf16.msra.mxu0 0
    %312 = vmatprep.subr.bf16.mxu0 0
    %313 = vmatpush1.bf16.msra.mxu0 0
    %314 = vmatprep.subr.bf16.mxu0 0
    %315 = vmatpush1.bf16.msra.mxu0 0
    %316 = vmatprep.subr.bf16.mxu0 0
    %317 = vmatpush1.bf16.msra.mxu0 0
    %318 = vmatprep.subr.bf16.mxu0 0
    %319 = vmatpush1.bf16.msra.mxu0 0
    %320 = vmatprep.subr.bf16.mxu0 0
    %321 = vmatpush1.bf16.msra.mxu0 0
    %322 = vmatprep.subr.bf16.mxu0 0
    %323 = vmatpush1.bf16.msra.mxu0 0
    %324 = vmatprep.subr.bf16.mxu0 0
    %325 = vmatpush1.bf16.msra.mxu0 0
    %326 = vmatprep.subr.bf16.mxu0 0
    %327 = vmatpush1.bf16.msra.mxu0 0
    %328 = vmatprep.subr.bf16.mxu0 0
    %329 = vmatpush1.bf16.msra.mxu0 0
    %330 = vmatprep.subr.bf16.mxu0 0
    %331 = vmatpush1.bf16.msra.mxu0 0
    %332 = vmatprep.mubr.bf16.mxu0 0
    %333 = vmatmul.mubr.bf16.gmra.mrb[0].mxu0 %v295
    %v334 = vpop.f32.mrb[0].mxu0
    %v335 = vadd.f32 %v267, %v334
    %v336 = vpop.f32.mrb[0].mxu0
    %v337 = vpop.f32.mrb[0].mxu0
    %v338 = vadd.f32 %v272, %v337
    %v339 = vpop.f32.mrb[0].mxu0
    %340 = vmatprep.mubr.bf16.mxu0 0
    %341 = vmatmul.mubr.bf16.gmra.mrb[0].mxu0 %v298
    %v342 = vpop.f32.mrb[0].mxu0
    %v343 = vadd.f32 %v277, %v342
    %v344 = vpop.f32.mrb[0].mxu0
    %v345 = vpop.f32.mrb[0].mxu0
    %v346 = vadd.f32 %v282, %v345
    %v347 = vpop.f32.mrb[0].mxu0
    %348 = vdwg.mxu0
    %v349 = vmul.f32 %v335, 0.1
    %v350 = vmul.f32 %v338, 0.1
    %v351 = vmul.f32 %v343, 0.1
    %v352 = vmul.f32 %v346, 0.1
    %v353 = vmax.f32 %v335, %v349
    %v354 = vmax.f32 %v338, %v350
    %v355 = vmax.f32 %v343, %v351
    %v356 = vmax.f32 %v346, %v352
    %v357 = vpack.c.bf16 %v354, %v353
    %v358 = vpack.c.bf16 %v356, %v355
    %v359 = vld [vmem:[%s7] sm:$0xf]
    %v360 = vld [vmem:[%s7 + $0x4] sm:$0xf]
    %v361 = vld [vmem:[%s7 + $0x8] sm:$0xf]
    %v362 = vld [vmem:[%s7 + $0xc] sm:$0xf]
    %v363 = vld [vmem:[%s8] sm:$0xff]
    %v364 = vld [vmem:[%s8 + $0x8] sm:$0xff]
    %v365 = vld [vmem:[%s8 + $0x10] sm:$0xff]
    %v366 = vld [vmem:[%s8 + $0x18] sm:$0xff]
    %368 = vset.pattern.permute.xlu0 0
    %369 = vperm.xlu0 %368, %v363
    %v370 = vpop.permute.xlu0 %369
    %373 = vset.pattern.permute.xlu0 0
    %374 = vperm.xlu0 %373, %v364
    %v375 = vpop.permute.xlu0 %374
    %378 = vset.pattern.permute.xlu0 0
    %379 = vperm.xlu0 %378, %v365
    %v380 = vpop.permute.xlu0 %379
    %383 = vset.pattern.permute.xlu0 0
    %384 = vperm.xlu0 %383, %v366
    %v385 = vpop.permute.xlu0 %384
    %v391 = vunpack.c.l.b16 %v359
    %v392 = vunpack.c.l.b16 %v360
    %v393 = vunpack.c.l.b16 %v361
    %v394 = vunpack.c.l.b16 %v362
    %v395 = vpack.c.b16 %v392, %v391
    %v396 = vpack.c.b16 %v394, %v393
    %v398 = vsel %vm190, %v395, 0
    %v401 = vsel %vm190, %v396, 0
    %403 = vmatprep.subr.bf16.mxu0 0
    %404 = vmatpush1.bf16.msra.mxu0 %v357
    %405 = vmatprep.subr.bf16.mxu0 0
    %406 = vmatpush1.bf16.msra.mxu0 %v358
    %407 = vmatprep.subr.bf16.mxu0 0
    %408 = vmatpush1.bf16.msra.mxu0 0
    %409 = vmatprep.subr.bf16.mxu0 0
    %410 = vmatpush1.bf16.msra.mxu0 0
    %411 = vmatprep.subr.bf16.mxu0 0
    %412 = vmatpush1.bf16.msra.mxu0 0
    %413 = vmatprep.subr.bf16.mxu0 0
    %414 = vmatpush1.bf16.msra.mxu0 0
    %415 = vmatprep.subr.bf16.mxu0 0
    %416 = vmatpush1.bf16.msra.mxu0 0
    %417 = vmatprep.subr.bf16.mxu0 0
    %418 = vmatpush1.bf16.msra.mxu0 0
    %419 = vmatprep.subr.bf16.mxu0 0
    %420 = vmatpush1.bf16.msra.mxu0 0
    %421 = vmatprep.subr.bf16.mxu0 0
    %422 = vmatpush1.bf16.msra.mxu0 0
    %423 = vmatprep.subr.bf16.mxu0 0
    %424 = vmatpush1.bf16.msra.mxu0 0
    %425 = vmatprep.subr.bf16.mxu0 0
    %426 = vmatpush1.bf16.msra.mxu0 0
    %427 = vmatprep.subr.bf16.mxu0 0
    %428 = vmatpush1.bf16.msra.mxu0 0
    %429 = vmatprep.subr.bf16.mxu0 0
    %430 = vmatpush1.bf16.msra.mxu0 0
    %431 = vmatprep.subr.bf16.mxu0 0
    %432 = vmatpush1.bf16.msra.mxu0 0
    %433 = vmatprep.subr.bf16.mxu0 0
    %434 = vmatpush1.bf16.msra.mxu0 0
    %435 = vmatprep.mubr.bf16.mxu0 0
    %436 = vmatmul.mubr.bf16.gmra.mrb[0].mxu0 %v398
    %v437 = vpop.f32.mrb[0].mxu0
    %v438 = vadd.f32 %v370, %v437
    %v439 = vpop.f32.mrb[0].mxu0
    %v440 = vpop.f32.mrb[0].mxu0
    %v441 = vadd.f32 %v375, %v440
    %v442 = vpop.f32.mrb[0].mxu0
    %443 = vmatprep.mubr.bf16.mxu0 0
    %444 = vmatmul.mubr.bf16.gmra.mrb[0].mxu0 %v401
    %v445 = vpop.f32.mrb[0].mxu0
    %v446 = vadd.f32 %v380, %v445
    %v447 = vpop.f32.mrb[0].mxu0
    %v448 = vpop.f32.mrb[0].mxu0
    %v449 = vadd.f32 %v385, %v448
    %v450 = vpop.f32.mrb[0].mxu0
    %451 = vdwg.mxu0
    %v452 = vmul.f32 %v438, 0.1
    %v453 = vmul.f32 %v441, 0.1
    %v454 = vmul.f32 %v446, 0.1
    %v455 = vmul.f32 %v449, 0.1
    %v456 = vmax.f32 %v438, %v452
    %v457 = vmax.f32 %v441, %v453
    %v458 = vmax.f32 %v446, %v454
    %v459 = vmax.f32 %v449, %v455
    %v460 = vpack.c.bf16 %v457, %v456
    %v461 = vpack.c.bf16 %v459, %v458
    %v462 = vld [vmem:[%s9] sm:$0x3]
    %v463 = vld [vmem:[%s10] sm:$0xf]
    %465 = vset.pattern.permute.xlu0 0
    %466 = vperm.xlu0 %465, %v463
    %v467 = vpop.permute.xlu0 %466
    %v470 = vsel %vm190, %v462, 0
    %472 = vmatprep.subr.bf16.mxu0 0
    %473 = vmatpush1.bf16.msra.mxu0 %v460
    %474 = vmatprep.subr.bf16.mxu0 0
    %475 = vmatpush1.bf16.msra.mxu0 %v461
    %476 = vmatprep.subr.bf16.mxu0 0
    %477 = vmatpush1.bf16.msra.mxu0 0
    %478 = vmatprep.subr.bf16.mxu0 0
    %479 = vmatpush1.bf16.msra.mxu0 0
    %480 = vmatprep.subr.bf16.mxu0 0
    %481 = vmatpush1.bf16.msra.mxu0 0
    %482 = vmatprep.subr.bf16.mxu0 0
    %483 = vmatpush1.bf16.msra.mxu0 0
    %484 = vmatprep.subr.bf16.mxu0 0
    %485 = vmatpush1.bf16.msra.mxu0 0
    %486 = vmatprep.subr.bf16.mxu0 0
    %487 = vmatpush1.bf16.msra.mxu0 0
    %488 = vmatprep.subr.bf16.mxu0 0
    %489 = vmatpush1.bf16.msra.mxu0 0
    %490 = vmatprep.subr.bf16.mxu0 0
    %491 = vmatpush1.bf16.msra.mxu0 0
    %492 = vmatprep.subr.bf16.mxu0 0
    %493 = vmatpush1.bf16.msra.mxu0 0
    %494 = vmatprep.subr.bf16.mxu0 0
    %495 = vmatpush1.bf16.msra.mxu0 0
    %496 = vmatprep.subr.bf16.mxu0 0
    %497 = vmatpush1.bf16.msra.mxu0 0
    %498 = vmatprep.subr.bf16.mxu0 0
    %499 = vmatpush1.bf16.msra.mxu0 0
    %500 = vmatprep.subr.bf16.mxu0 0
    %501 = vmatpush1.bf16.msra.mxu0 0
    %502 = vmatprep.subr.bf16.mxu0 0
    %503 = vmatpush1.bf16.msra.mxu0 0
    %504 = vmatprep.mubr.bf16.mxu0 0
    %505 = vmatmul.mubr.bf16.gmra.mrb[0].mxu0 %v470
    %v506 = vpop.f32.mrb[0].mxu0
    %v507 = vadd.f32 %v467, %v506
    %v508 = vpop.f32.mrb[0].mxu0
    %v509 = vpop.f32.mrb[0].mxu0
    %v510 = vpop.f32.mrb[0].mxu0
    %511 = vdwg.mxu0
    %vm512 = vcmask 1043456
    %v513 = vsel %vm512, %v507, -inf
    %v514 = vrot.slane %v513, 4
    %v515 = vmax.f32 %v513, %v514
    %v516 = vrot.slane %v515, 2
    %v517 = vmax.f32 %v515, %v516
    %v518 = vrot.slane %v517, 1
    %v519 = vmax.f32 %v517, %v518
    %v520 = vsub.f32 %v507, %v519
    %v521 = vmul.f32 %v520, 1.442695
    %v522 = vpow.pop %v521
    %v523 = vsel %vm512, %v522, 0.0
    %v524 = vrot.slane %v523, 4
    %v525 = vadd.f32 %v523, %v524
    %v526 = vrot.slane %v525, 2
    %v527 = vadd.f32 %v525, %v526
    %v528 = vrot.slane %v527, 1
    %v529 = vadd.f32 %v527, %v528
    %v530 = vrcp.pop %v529
    %v531 = vmul.f32 %v522, %v530
    %532 = vst [vmem:[#allocation2] sm:$0xf] %v531
    // Predicated region
    $region46: #{tpu_custom_call.1} parent=1 // pred_check
      _
    $region47: #{tpu_custom_call.1} parent=1 // pred_check_branch
      %534 = sbr.rel (0) target = $region49
    $region48: #{tpu_custom_call.1} parent=1 // pred_region
      %s536 = ssub.s32 64, 64
      %537 = vsyncadd [#allocation3], %s536
      %s539 = sshll.u32 [#allocation2], 4
      %s540 = int_to_ptr.vmem [resolvable:$true] %s539
      %542 = dma.vmem_to_hbm [thread:$0]  %s540, 64, %s11, [#allocation3]
    $region49: #{tpu_custom_call.1} parent=1 // pred_fallthru
      _
    // Predicated region
    $region50: #{tpu_custom_call.1} parent=1 // pred_check
      _
    $region51: #{tpu_custom_call.1} parent=1 // pred_check_branch
      %544 = sbr.rel (0) target = $region53
    $region52: #{tpu_custom_call.1} parent=1 // pred_region
      %545 = dma.done [#allocation3], 64
    $region53: #{tpu_custom_call.1} parent=1 // pred_fallthru
      _
    %546 = vsyncpa [#allocation3], 1

</llo_original>
